<compile_context>
chip_gen: v6e
topology: v6e:2x2x1
jax: 0.10.0
libtpu: 0.0.40
codegen_flags: <defaults>
</compile_context>

<pallas_src>
import numpy as np
import jax
import jax.numpy as jnp
from jax import lax
from jax.experimental import pallas as pl
from jax.experimental.pallas import tpu as pltpu  # noqa: F401  (TPU backend assumed)


# ----------------------------------------------------------------------------
# Fused kernel: Laplacian build + polynomial residual + state update epilogue
# ----------------------------------------------------------------------------
def _make_fused_kernel(a):
    """`a` = static tuple of polynomial coefficients (fixed at module init)."""
    deg = len(a) - 1

    def kernel(b_ref, s_ref, q_ref, y_ref, ds_ref, dy_ref, sig_ref, snew_ref):
        B = b_ref[...]                                    # (N, E)
        s = s_ref[...]                                    # (1, E)

        # L = B diag(s) B^T : contract the edge axis of both operands (no transpose).
        L = lax.dot_general(B * s, B,
                            dimension_numbers=(((1,), (1,)), ((), ())),
                            preferred_element_type=jnp.float32)     # (N, N), registers only

        # Y_pred = sum_i a[i] * L^i @ Q   (deg is tiny & static -> fully unrolled)
        Q = q_ref[...]                                    # (N, Tmax)
        acc = a[0] * Q
        P = Q
        for i in range(1, deg + 1):
            P = jnp.dot(L, P, preferred_element_type=jnp.float32)
            acc = acc + a[i] * P

        dY = y_ref[...] - acc
        dy_ref[...] = dY
        sig_ref[...] = jnp.sqrt(jnp.sum(dY * dY, keepdims=True)) + 1e-12

        # Epilogue: s <- max(s + delta_s, 0)
        snew_ref[...] = jnp.maximum(s + ds_ref[...], 0.0)

    return kernel


def _make_fused_call(a, N, E, Tmax):
    kernel = _make_fused_kernel(a)
    return pl.pallas_call(
        kernel,
        out_shape=(jax.ShapeDtypeStruct((N, Tmax), jnp.float32),   # dY
                   jax.ShapeDtypeStruct((1, 1), jnp.float32),      # sigma_Y
                   jax.ShapeDtypeStruct((1, E), jnp.float32)),     # s_new
        # No grid: single invocation, full-array blocks resident in VMEM.
        in_specs=[pl.BlockSpec((N, E), lambda: (0, 0)),
                  pl.BlockSpec((1, E), lambda: (0, 0)),
                  pl.BlockSpec((N, Tmax), lambda: (0, 0)),
                  pl.BlockSpec((N, Tmax), lambda: (0, 0)),
                  pl.BlockSpec((1, E), lambda: (0, 0))],
        out_specs=(pl.BlockSpec((N, Tmax), lambda: (0, 0)),
                   pl.BlockSpec((1, 1), lambda: (0, 0)),
                   pl.BlockSpec((1, E), lambda: (0, 0))),
    )


# ----------------------------------------------------------------------------
# Fixed-shape history ring buffer (JAX glue, runs inside the jitted step)
# ----------------------------------------------------------------------------
def _push_column(buf, col, count, M):
    """Emulates: `if cols>0: keep last M cols; then hstack newest`, on a fixed (N, M+1) buffer.

    While count < M+1 the newest column is written at index `count`; once full, the buffer is
    rolled left by one (dropping the oldest) and the newest column is written at index M.
    Unused trailing columns stay zero (they contribute nothing to dY or sigma)."""
    full = count >= (M + 1)
    rolled = jnp.where(full, jnp.roll(buf, -1, axis=1), buf)
    idx = jnp.where(full, M, count).astype(jnp.int32)
    return lax.dynamic_update_slice_in_dim(rolled, col, idx, axis=1)


def _make_step_fn(a, M, N, E):
    Tmax = M + 1
    fused = _make_fused_call(tuple(a), N, E, Tmax)

    @jax.jit
    def step(B, s, prev_q, prev_y, count, q, y, delta_s):
        prev_q = _push_column(prev_q, q, count, M)
        prev_y = _push_column(prev_y, y, count, M)
        count = jnp.minimum(count + 1, M + 1)
        dY, sigma, s_new = fused(B, s.reshape(1, E), prev_q, prev_y,
                                 delta_s.reshape(1, E))
        return s_new.reshape(E), prev_q, prev_y, count, dY, sigma[0, 0]

    return step


# ----------------------------------------------------------------------------
# Module wrapper (bookkeeping = glue inside one jit, compute = fused Pallas kernel)
# ----------------------------------------------------------------------------
class ChangeDetectionMethodPallas:
    def __init__(self, B, m, StateInit, poly_c, lambda_1=10, lambda_2=0):
        self.lambda_1 = lambda_1
        self.lambda_2 = lambda_2
        self.B = jnp.asarray(B, jnp.float32)                         # (N, E)
        self.M = int(m)
        self.s = jnp.asarray(StateInit, jnp.float32).reshape(-1)     # (E,)
        self.a = tuple(float(c) for c in poly_c)
        N, E = self.B.shape
        Tmax = self.M + 1
        self.prev_q = jnp.zeros((N, Tmax), jnp.float32)
        self.prev_y = jnp.zeros((N, Tmax), jnp.float32)
        self.count = jnp.int32(0)
        self._step = _make_step_fn(self.a, self.M, N, E)
        self.last_dY = None
        self.last_sigma = None

    def forward(self, q, y):
        q = jnp.asarray(q, jnp.float32).reshape(-1, 1)
        y = jnp.asarray(y, jnp.float32).reshape(-1, 1)

        # TODO(synk): onlineDirectedGraphEstimtion is a CVXPY L1 + nuclear-norm convex program
        # (MOSEK/CLARABEL/SCS); there is no Pallas equivalent, so we take the module's
        # documented fallback path delta_s = zeros_like(s).  dY / sigma_Y (its inputs) are
        # still produced by the fused kernel.
        delta_s = jnp.zeros_like(self.s)

        (self.s, self.prev_q, self.prev_y, self.count,
         self.last_dY, self.last_sigma) = self._step(
            self.B, self.s, self.prev_q, self.prev_y, self.count, q, y, delta_s)
        return self.s


# ----------------------------------------------------------------------------
if __name__ == "__main__":
    N, E, M = 16, 32, 4

    # Deterministic directed-graph incidence matrix B (N, E): edge e = (e % N) -> ((3e+1) % N)
    edges = np.arange(E)
    src = edges % N
    dst = (3 * edges + 1) % N                 # never equals src for N=16
    B_np = np.zeros((N, E), dtype=np.float64)
    B_np[src, edges] = 1.0
    B_np[dst, edges] = -1.0

    key = jax.random.PRNGKey(0)
    k_state, k_stream = jax.random.split(key)
    state_init = jax.random.uniform(k_state, (E,), jnp.float32)      # nonnegative edge weights
    poly_c = [0.0, 1.0, 0.5, 0.25]                                   # polynomial filter coeffs

    cdm = ChangeDetectionMethodPallas(B_np, M, state_init, poly_c,
                                      lambda_1=10, lambda_2=0)

    # float64 numpy reference of the same forward math (solver fallback delta_s = 0)
    s_np = np.asarray(state_init, np.float64)
    prev_q_np = np.empty((N, 0))
    prev_y_np = np.empty((N, 0))

    s_out = None
    for _ in range(7):                        # > M+1 steps -> exercises the rolling window path
        kq, ky, k_stream = jax.random.split(k_stream, 3)
        q = jax.random.normal(kq, (N, 1), jnp.float32)
        y = jax.random.normal(ky, (N, 1), jnp.float32)

        s_out = cdm.forward(q, y)

        # --- reference step (float64 numpy) ---
        L_np = B_np @ np.diag(s_np) @ B_np.T
        if prev_y_np.shape[1] > 0:
            prev_y_np = prev_y_np[:, -M:]
        prev_y_np = np.hstack((prev_y_np, np.asarray(y, np.float64)))
        if prev_q_np.shape[1] > 0:
            prev_q_np = prev_q_np[:, -M:]
        prev_q_np = np.hstack((prev_q_np, np.asarray(q, np.float64)))
        acc = poly_c[0] * prev_q_np
        P = prev_q_np
        for i in range(1, len(poly_c)):
            P = L_np @ P
            acc = acc + poly_c[i] * P
        dY_ref = prev_y_np - acc
        sigma_ref = np.linalg.norm(dY_ref, 'fro') + 1e-12
        s_np = np.maximum(s_np + 0.0, 0.0)

        # --- tolerance check (kernel is float32 vs float64 reference) ---
        T = prev_q_np.shape[1]
        dY_k = np.asarray(cdm.last_dY)
        assert np.allclose(dY_k[:, :T], dY_ref, rtol=1e-2, atol=1e-2), "dY mismatch"
        assert np.allclose(dY_k[:, T:], 0.0), "history padding not zero"
        assert abs(float(cdm.last_sigma) - sigma_ref) <= 1e-2 * max(sigma_ref, 1.0), "sigma mismatch"

    s_out = jax.block_until_ready(s_out)
    assert s_out.shape == (E,) and bool(jnp.all(s_out >= 0.0))
    assert np.allclose(np.asarray(s_out), s_np, rtol=1e-5, atol=1e-6)
    print("KERNEL_OK")
</pallas_src>

<mosaic_0001>
module attributes {stable_mosaic.version = 11 : i64} {
  func.func @kernel(%arg0: memref<16x32xf32, #tpu.memory_space<vmem>>, %arg1: memref<1x32xf32, #tpu.memory_space<vmem>>, %arg2: memref<16x5xf32, #tpu.memory_space<vmem>>, %arg3: memref<16x5xf32, #tpu.memory_space<vmem>>, %arg4: memref<1x32xf32, #tpu.memory_space<vmem>>, %arg5: memref<16x5xf32, #tpu.memory_space<vmem>>, %arg6: memref<1x1xf32, #tpu.memory_space<vmem>>, %arg7: memref<1x32xf32, #tpu.memory_space<vmem>>) attributes {dimension_semantics = [], scalar_prefetch = 0 : i64, scratch_operands = 0 : i64, tpu.core_type = #tpu.core_type<tc>} {
    %c0 = arith.constant 0 : index
    %c0_0 = arith.constant 0 : index
    %0 = vector.load %arg0[%c0, %c0_0] : memref<16x32xf32, #tpu.memory_space<vmem>>, vector<16x32xf32>
    %c0_1 = arith.constant 0 : index
    %c0_2 = arith.constant 0 : index
    %1 = vector.load %arg1[%c0_1, %c0_2] : memref<1x32xf32, #tpu.memory_space<vmem>>, vector<1x32xf32>
    %2 = vector.broadcast %1 : vector<1x32xf32> to vector<16x32xf32>
    %3 = arith.mulf %0, %2 : vector<16x32xf32>
    %cst = arith.constant dense<0.000000e+00> : vector<16x16xf32>
    %4 = tpu.matmul %3, %0, %cst {dimension_numbers = #tpu.dot_dimension_numbers<[1], [1], [0], [0], [0, 0, 1, 0], [], []>} : vector<16x32xf32>, vector<16x32xf32>, vector<16x16xf32> -> vector<16x16xf32>
    %c0_3 = arith.constant 0 : index
    %c0_4 = arith.constant 0 : index
    %5 = vector.load %arg2[%c0_3, %c0_4] : memref<16x5xf32, #tpu.memory_space<vmem>>, vector<16x5xf32>
    %cst_5 = arith.constant 0.000000e+00 : f32
    %6 = vector.broadcast %cst_5 : f32 to vector<16x5xf32>
    %7 = arith.mulf %6, %5 : vector<16x5xf32>
    %cst_6 = arith.constant dense<0.000000e+00> : vector<16x5xf32>
    %8 = tpu.matmul %4, %5, %cst_6 {dimension_numbers = #tpu.dot_dimension_numbers<[1], [0], [0], [1], [0, 0, 1, 1], [], []>} : vector<16x16xf32>, vector<16x5xf32>, vector<16x5xf32> -> vector<16x5xf32>
    %cst_7 = arith.constant 1.000000e+00 : f32
    %9 = vector.broadcast %cst_7 : f32 to vector<16x5xf32>
    %10 = arith.mulf %9, %8 : vector<16x5xf32>
    %11 = arith.addf %7, %10 : vector<16x5xf32>
    %cst_8 = arith.constant dense<0.000000e+00> : vector<16x5xf32>
    %12 = tpu.matmul %4, %8, %cst_8 {dimension_numbers = #tpu.dot_dimension_numbers<[1], [0], [0], [1], [0, 0, 1, 1], [], []>} : vector<16x16xf32>, vector<16x5xf32>, vector<16x5xf32> -> vector<16x5xf32>
    %cst_9 = arith.constant 5.000000e-01 : f32
    %13 = vector.broadcast %cst_9 : f32 to vector<16x5xf32>
    %14 = arith.mulf %13, %12 : vector<16x5xf32>
    %15 = arith.addf %11, %14 : vector<16x5xf32>
    %cst_10 = arith.constant dense<0.000000e+00> : vector<16x5xf32>
    %16 = tpu.matmul %4, %12, %cst_10 {dimension_numbers = #tpu.dot_dimension_numbers<[1], [0], [0], [1], [0, 0, 1, 1], [], []>} : vector<16x16xf32>, vector<16x5xf32>, vector<16x5xf32> -> vector<16x5xf32>
    %cst_11 = arith.constant 2.500000e-01 : f32
    %17 = vector.broadcast %cst_11 : f32 to vector<16x5xf32>
    %18 = arith.mulf %17, %16 : vector<16x5xf32>
    %19 = arith.addf %15, %18 : vector<16x5xf32>
    %c0_12 = arith.constant 0 : index
    %c0_13 = arith.constant 0 : index
    %20 = vector.load %arg3[%c0_12, %c0_13] : memref<16x5xf32, #tpu.memory_space<vmem>>, vector<16x5xf32>
    %21 = arith.subf %20, %19 : vector<16x5xf32>
    %c0_14 = arith.constant 0 : index
    %c0_15 = arith.constant 0 : index
    %22 = vector.load %arg5[%c0_14, %c0_15] : memref<16x5xf32, #tpu.memory_space<vmem>>, vector<16x5xf32>
    tpu.vector_store %arg5[%c0_14, %c0_15], %21 {strides = array<i32>} : memref<16x5xf32, #tpu.memory_space<vmem>>, vector<16x5xf32>,
    %23 = arith.mulf %21, %21 : vector<16x5xf32>
    %24 = vector.shape_cast %23 : vector<16x5xf32> to vector<1x16x5xf32>
    %cst_16 = arith.constant dense<0.000000e+00> : vector<1xf32>
    %25 = vector.multi_reduction <add>, %24, %cst_16 [1, 2] : vector<1x16x5xf32> to vector<1xf32>
    %26 = vector.shape_cast %25 : vector<1xf32> to vector<1x1x1xf32>
    %27 = vector.extract %26[0, 0, 0] : f32 from vector<1x1x1xf32>
    %28 = vector.broadcast %27 : f32 to vector<1x1xf32>
    %29 = math.sqrt %28 : vector<1x1xf32>
    %cst_17 = arith.constant 9.99999996E-13 : f32
    %30 = vector.broadcast %cst_17 : f32 to vector<1x1xf32>
    %31 = arith.addf %29, %30 : vector<1x1xf32>
    %c0_18 = arith.constant 0 : index
    %c0_19 = arith.constant 0 : index
    %32 = vector.load %arg6[%c0_18, %c0_19] : memref<1x1xf32, #tpu.memory_space<vmem>>, vector<1x1xf32>
    tpu.vector_store %arg6[%c0_18, %c0_19], %31 {strides = array<i32>} : memref<1x1xf32, #tpu.memory_space<vmem>>, vector<1x1xf32>,
    %c0_20 = arith.constant 0 : index
    %c0_21 = arith.constant 0 : index
    %33 = vector.load %arg4[%c0_20, %c0_21] : memref<1x32xf32, #tpu.memory_space<vmem>>, vector<1x32xf32>
    %34 = arith.addf %1, %33 : vector<1x32xf32>
    %cst_22 = arith.constant 0.000000e+00 : f32
    %35 = vector.broadcast %cst_22 : f32 to vector<1x32xf32>
    %36 = arith.maximumf %34, %35 : vector<1x32xf32>
    %c0_23 = arith.constant 0 : index
    %c0_24 = arith.constant 0 : index
    %37 = vector.load %arg7[%c0_23, %c0_24] : memref<1x32xf32, #tpu.memory_space<vmem>>, vector<1x32xf32>
    tpu.vector_store %arg7[%c0_23, %c0_24], %36 {strides = array<i32>} : memref<1x32xf32, #tpu.memory_space<vmem>>, vector<1x32xf32>,
    return
  }
}

</mosaic_0001>

<llo_original>
// kernel: step.1
$region0: #{step.1}
  #allocation0 [shape = 'u32[]', space=smem, size = 0x4, offset = 0x4, fixed_abs, tag = 'smem constant byte address 0x4 - core index']
  #allocation1 [shape = 'u32[144,128]{1,0:T(1,128)}', space=vmem, size = 0x12000, scoped, tag = 'internal scratch']
  %s0 = inlined_call_operand.vmem [shape: f32[16,32], index: 0, kind: input, shape index: {}]
  %s1 = inlined_call_operand.vmem [shape: f32[1,32], index: 1, kind: input, shape index: {}]
  %s2 = inlined_call_operand.vmem [shape: f32[16,5], index: 2, kind: input, shape index: {}]
  %s3 = inlined_call_operand.vmem [shape: f32[16,5], index: 3, kind: input, shape index: {}]
  %s4 = inlined_call_operand.vmem [shape: f32[1,32], index: 4, kind: input, shape index: {}]
  %s5 = inlined_call_operand.vmem [shape: f32[16,5], index: 5, kind: output, shape index: {0}]
  %s6 = inlined_call_operand.hbm [shape: f32[1,1], index: 6, kind: output, shape index: {1}]
  %s7 = inlined_call_operand.hbm [shape: f32[1,32], index: 7, kind: output, shape index: {2}]
  %8 = xla_tuple %s5, %s6, %s7
  %s9 = sld [smem:[#allocation0]]
  $region46: #{step.1} parent=0
    _
  %s11 = ssub.s32 1, %s9
  %s12 = scalar_select 0, %s11, %s9
  $region1: #{step.1} parent=0
    #allocation2 [shape = 'u8[512]{0}', space=vmem, size = 0x400, scoped, tag = 'output window, operand 1, single buffered']
    #allocation3 [shape = 's32[1]{0}', space=sflag, size = 0x4, scoped, tag = 'scoped memory for step.1']
    #allocation4 [shape = 'u8[512]{0}', space=vmem, size = 0x400, scoped, tag = 'output window, operand 2, single buffered']
    #allocation5 [shape = 's32[1]{0}', space=sflag, size = 0x4, scoped, tag = 'scoped memory for step.1']
    %13 = vsyncpa [#allocation3], 0
    %14 = vsyncpa [#allocation5], 0
    // Predicated region
    $region2: #{step.1} parent=1 // pred_check
      _
    $region3: #{step.1} parent=1 // pred_check_branch
      %16 = sbr.rel (0) target = $region5
    $region4: #{step.1} parent=1 // pred_region
      _
    $region5: #{step.1} parent=1 // pred_fallthru
      _
    // Predicated region
    $region6: #{step.1} parent=1 // pred_check
      _
    $region7: #{step.1} parent=1 // pred_check_branch
      %18 = sbr.rel (0) target = $region9
    $region8: #{step.1} parent=1 // pred_region
      _
    $region9: #{step.1} parent=1 // pred_fallthru
      _
    // Predicated region
    $region10: #{step.1} parent=1 // pred_check
      _
    $region11: #{step.1} parent=1 // pred_check_branch
      %20 = sbr.rel (0) target = $region13
    $region12: #{step.1} parent=1 // pred_region
      _
    $region13: #{step.1} parent=1 // pred_fallthru
      _
    // Predicated region
    $region14: #{step.1} parent=1 // pred_check
      _
    $region15: #{step.1} parent=1 // pred_check_branch
      %22 = sbr.rel (0) target = $region17
    $region16: #{step.1} parent=1 // pred_region
      _
    $region17: #{step.1} parent=1 // pred_fallthru
      _
    // Predicated region
    $region18: #{step.1} parent=1 // pred_check
      _
    $region19: #{step.1} parent=1 // pred_check_branch
      %24 = sbr.rel (0) target = $region21
    $region20: #{step.1} parent=1 // pred_region
      _
    $region21: #{step.1} parent=1 // pred_fallthru
      _
    %v25 = vld [vmem:[%s0] sm:$0xff]
    %v26 = vld [vmem:[%s0 + $0x8] sm:$0xff]
    %v27 = vld [vmem:[%s1] sm:$0x1]
    %v29 = vlaneseq
    %v30 = vshrl.u32 %v29, 7
    %v31 = vsub.s32 0, %v30
    %v32 = vrot.slane %v27, %v31
    %v34 = vmul.f32 %v25, %v32
    %v35 = vmul.f32 %v26, %v32
    %vm36 = vcmask 261120
    %v38 = vsel %vm36, %v34, 0
    %v41 = vsel %vm36, %v35, 0
    %v44 = vsel %vm36, %v25, 0
    %v47 = vsel %vm36, %v26, 0
    %49 = vmatprep.subr.mxu0 0.0
    %50 = vmatpush1.xpose.msra.mxu0 0.0
    %51 = vmatprep.subr.mxu0 0.0
    %52 = vmatpush1.xpose.msra.mxu0 0.0
    %53 = vmatprep.subr.mxu0 0.0
    %54 = vmatpush1.xpose.msra.mxu0 0.0
    %55 = vmatprep.subr.mxu0 0.0
    %56 = vmatpush1.xpose.msra.mxu0 0.0
    %57 = vmatprep.subr.mxu0 0.0
    %58 = vmatpush1.xpose.msra.mxu0 0.0
    %59 = vmatprep.subr.mxu0 0.0
    %60 = vmatpush1.xpose.msra.mxu0 0.0
    %61 = vmatprep.subr.mxu0 0.0
    %62 = vmatpush1.xpose.msra.mxu0 0.0
    %63 = vmatprep.subr.mxu0 0.0
    %64 = vmatpush1.xpose.msra.mxu0 0.0
    %65 = vmatprep.subr.mxu0 0.0
    %66 = vmatpush1.xpose.msra.mxu0 0.0
    %67 = vmatprep.subr.mxu0 0.0
    %68 = vmatpush1.xpose.msra.mxu0 0.0
    %69 = vmatprep.subr.mxu0 0.0
    %70 = vmatpush1.xpose.msra.mxu0 0.0
    %71 = vmatprep.subr.mxu0 0.0
    %72 = vmatpush1.xpose.msra.mxu0 0.0
    %73 = vmatprep.subr.mxu0 0.0
    %74 = vmatpush1.xpose.msra.mxu0 0.0
    %75 = vmatprep.subr.mxu0 0.0
    %76 = vmatpush1.xpose.msra.mxu0 0.0
    %77 = vmatprep.subr.mxu0 0.0
    %78 = vmatpush1.xpose.msra.mxu0 %v47
    %79 = vmatprep.subr.mxu0 0.0
    %80 = vmatpush1.xpose.msra.mxu0 %v44
    %81 = vmatprep.subr.mxu0 0.0
    %82 = vmatpush2.xpose.msra.mxu0 0.0
    %83 = vmatprep.subr.mxu0 0.0
    %84 = vmatpush2.xpose.msra.mxu0 0.0
    %85 = vmatprep.subr.mxu0 0.0
    %86 = vmatpush2.xpose.msra.mxu0 0.0
    %87 = vmatprep.subr.mxu0 0.0
    %88 = vmatpush2.xpose.msra.mxu0 0.0
    %89 = vmatprep.subr.mxu0 0.0
    %90 = vmatpush2.xpose.msra.mxu0 0.0
    %91 = vmatprep.subr.mxu0 0.0
    %92 = vmatpush2.xpose.msra.mxu0 0.0
    %93 = vmatprep.subr.mxu0 0.0
    %94 = vmatpush2.xpose.msra.mxu0 0.0
    %95 = vmatprep.subr.mxu0 0.0
    %96 = vmatpush2.xpose.msra.mxu0 0.0
    %97 = vmatprep.subr.mxu0 0.0
    %98 = vmatpush2.xpose.msra.mxu0 0.0
    %99 = vmatprep.subr.mxu0 0.0
    %100 = vmatpush2.xpose.msra.mxu0 0.0
    %101 = vmatprep.subr.mxu0 0.0
    %102 = vmatpush2.xpose.msra.mxu0 0.0
    %103 = vmatprep.subr.mxu0 0.0
    %104 = vmatpush2.xpose.msra.mxu0 0.0
    %105 = vmatprep.subr.mxu0 0.0
    %106 = vmatpush2.xpose.msra.mxu0 0.0
    %107 = vmatprep.subr.mxu0 0.0
    %108 = vmatpush2.xpose.msra.mxu0 0.0
    %109 = vmatprep.subr.mxu0 0.0
    %110 = vmatpush2.xpose.msra.mxu0 0.0
    %111 = vmatprep.subr.mxu0 0.0
    %112 = vmatpush2.xpose.msra.mxu0 0.0
    %113 = vmatprep.mubr.f32.mxu0 0.0
    %114 = vmatmul.mubr.f32.gmra.mxu0 %v38
    %v115 = vpop.f32.mrf.mxu0
    %v116 = vadd.f32 0.0, %v115
    %v117 = vpop.f32.mrf.mxu0
    %118 = vmatprep.mubr.f32.mxu0 0.0
    %119 = vmatmul.mubr.f32.gmra.mxu0 %v41
    %v120 = vpop.f32.mrf.mxu0
    %v121 = vadd.f32 0.0, %v120
    %v122 = vpop.f32.mrf.mxu0
    %123 = vdwg.mxu0
    %v124 = vld [vmem:[%s2] sm:$0xff]
    %v125 = vld [vmem:[%s2 + $0x8] sm:$0xff]
    %v126 = vmul.f32 %v124, 0.0
    %v127 = vmul.f32 %v125, 0.0
    %vm128 = vcmask 130048
    %v130 = vsel %vm128, %v116, 0
    %v133 = vsel %vm128, %v121, 0
    %135 = vmatprep.subr.mxu0 0.0
    %136 = vmatpush1.msra.mxu0 0.0
    %137 = vmatprep.subr.mxu0 0.0
    %138 = vmatpush1.msra.mxu0 0.0
    %139 = vmatprep.subr.mxu0 0.0
    %140 = vmatpush1.msra.mxu0 0.0
    %141 = vmatprep.subr.mxu0 0.0
    %142 = vmatpush1.msra.mxu0 0.0
    %143 = vmatprep.subr.mxu0 0.0
    %144 = vmatpush1.msra.mxu0 0.0
    %145 = vmatprep.subr.mxu0 0.0
    %146 = vmatpush1.msra.mxu0 0.0
    %147 = vmatprep.subr.mxu0 0.0
    %148 = vmatpush1.msra.mxu0 0.0
    %149 = vmatprep.subr.mxu0 0.0
    %150 = vmatpush1.msra.mxu0 0.0
    %151 = vmatprep.subr.mxu0 0.0
    %152 = vmatpush1.msra.mxu0 0.0
    %153 = vmatprep.subr.mxu0 0.0
    %154 = vmatpush1.msra.mxu0 0.0
    %155 = vmatprep.subr.mxu0 0.0
    %156 = vmatpush1.msra.mxu0 0.0
    %157 = vmatprep.subr.mxu0 0.0
    %158 = vmatpush1.msra.mxu0 0.0
    %159 = vmatprep.subr.mxu0 0.0
    %160 = vmatpush1.msra.mxu0 0.0
    %161 = vmatprep.subr.mxu0 0.0
    %162 = vmatpush1.msra.mxu0 0.0
    %163 = vmatprep.subr.mxu0 0.0
    %164 = vmatpush1.msra.mxu0 %v125
    %165 = vmatprep.subr.mxu0 0.0
    %166 = vmatpush1.msra.mxu0 %v124
    %167 = vmatprep.subr.mxu0 0.0
    %168 = vmatpush2.msra.mxu0 0.0
    %169 = vmatprep.subr.mxu0 0.0
    %170 = vmatpush2.msra.mxu0 0.0
    %171 = vmatprep.subr.mxu0 0.0
    %172 = vmatpush2.msra.mxu0 0.0
    %173 = vmatprep.subr.mxu0 0.0
    %174 = vmatpush2.msra.mxu0 0.0
    %175 = vmatprep.subr.mxu0 0.0
    %176 = vmatpush2.msra.mxu0 0.0
    %177 = vmatprep.subr.mxu0 0.0
    %178 = vmatpush2.msra.mxu0 0.0
    %179 = vmatprep.subr.mxu0 0.0
    %180 = vmatpush2.msra.mxu0 0.0
    %181 = vmatprep.subr.mxu0 0.0
    %182 = vmatpush2.msra.mxu0 0.0
    %183 = vmatprep.subr.mxu0 0.0
    %184 = vmatpush2.msra.mxu0 0.0
    %185 = vmatprep.subr.mxu0 0.0
    %186 = vmatpush2.msra.mxu0 0.0
    %187 = vmatprep.subr.mxu0 0.0
    %188 = vmatpush2.msra.mxu0 0.0
    %189 = vmatprep.subr.mxu0 0.0
    %190 = vmatpush2.msra.mxu0 0.0
    %191 = vmatprep.subr.mxu0 0.0
    %192 = vmatpush2.msra.mxu0 0.0
    %193 = vmatprep.subr.mxu0 0.0
    %194 = vmatpush2.msra.mxu0 0.0
    %195 = vmatprep.subr.mxu0 0.0
    %196 = vmatpush2.msra.mxu0 0.0
    %197 = vmatprep.subr.mxu0 0.0
    %198 = vmatpush2.msra.mxu0 0.0
    %199 = vmatprep.mubr.f32.mxu0 0.0
    %200 = vmatmul.mubr.f32.gmra.mxu0 %v130
    %v201 = vpop.f32.mrf.mxu0
    %v202 = vadd.f32 0.0, %v201
    %v203 = vpop.f32.mrf.mxu0
    %204 = vmatprep.mubr.f32.mxu0 0.0
    %205 = vmatmul.mubr.f32.gmra.mxu0 %v133
    %v206 = vpop.f32.mrf.mxu0
    %v207 = vadd.f32 0.0, %v206
    %v208 = vpop.f32.mrf.mxu0
    %209 = vdwg.mxu0
    %v210 = vadd.f32 %v126, %v202
    %v211 = vadd.f32 %v127, %v207
    %212 = vmatprep.subr.mxu0 0.0
    %213 = vmatpush1.msra.mxu0 0.0
    %214 = vmatprep.subr.mxu0 0.0
    %215 = vmatpush1.msra.mxu0 0.0
    %216 = vmatprep.subr.mxu0 0.0
    %217 = vmatpush1.msra.mxu0 0.0
    %218 = vmatprep.subr.mxu0 0.0
    %219 = vmatpush1.msra.mxu0 0.0
    %220 = vmatprep.subr.mxu0 0.0
    %221 = vmatpush1.msra.mxu0 0.0
    %222 = vmatprep.subr.mxu0 0.0
    %223 = vmatpush1.msra.mxu0 0.0
    %224 = vmatprep.subr.mxu0 0.0
    %225 = vmatpush1.msra.mxu0 0.0
    %226 = vmatprep.subr.mxu0 0.0
    %227 = vmatpush1.msra.mxu0 0.0
    %228 = vmatprep.subr.mxu0 0.0
    %229 = vmatpush1.msra.mxu0 0.0
    %230 = vmatprep.subr.mxu0 0.0
    %231 = vmatpush1.msra.mxu0 0.0
    %232 = vmatprep.subr.mxu0 0.0
    %233 = vmatpush1.msra.mxu0 0.0
    %234 = vmatprep.subr.mxu0 0.0
    %235 = vmatpush1.msra.mxu0 0.0
    %236 = vmatprep.subr.mxu0 0.0
    %237 = vmatpush1.msra.mxu0 0.0
    %238 = vmatprep.subr.mxu0 0.0
    %239 = vmatpush1.msra.mxu0 0.0
    %240 = vmatprep.subr.mxu0 0.0
    %241 = vmatpush1.msra.mxu0 %v207
    %242 = vmatprep.subr.mxu0 0.0
    %243 = vmatpush1.msra.mxu0 %v202
    %244 = vmatprep.subr.mxu0 0.0
    %245 = vmatpush2.msra.mxu0 0.0
    %246 = vmatprep.subr.mxu0 0.0
    %247 = vmatpush2.msra.mxu0 0.0
    %248 = vmatprep.subr.mxu0 0.0
    %249 = vmatpush2.msra.mxu0 0.0
    %250 = vmatprep.subr.mxu0 0.0
    %251 = vmatpush2.msra.mxu0 0.0
    %252 = vmatprep.subr.mxu0 0.0
    %253 = vmatpush2.msra.mxu0 0.0
    %254 = vmatprep.subr.mxu0 0.0
    %255 = vmatpush2.msra.mxu0 0.0
    %256 = vmatprep.subr.mxu0 0.0
    %257 = vmatpush2.msra.mxu0 0.0
    %258 = vmatprep.subr.mxu0 0.0
    %259 = vmatpush2.msra.mxu0 0.0
    %260 = vmatprep.subr.mxu0 0.0
    %261 = vmatpush2.msra.mxu0 0.0
    %262 = vmatprep.subr.mxu0 0.0
    %263 = vmatpush2.msra.mxu0 0.0
    %264 = vmatprep.subr.mxu0 0.0
    %265 = vmatpush2.msra.mxu0 0.0
    %266 = vmatprep.subr.mxu0 0.0
    %267 = vmatpush2.msra.mxu0 0.0
    %268 = vmatprep.subr.mxu0 0.0
    %269 = vmatpush2.msra.mxu0 0.0
    %270 = vmatprep.subr.mxu0 0.0
    %271 = vmatpush2.msra.mxu0 0.0
    %272 = vmatprep.subr.mxu0 0.0
    %273 = vmatpush2.msra.mxu0 0.0
    %274 = vmatprep.subr.mxu0 0.0
    %275 = vmatpush2.msra.mxu0 0.0
    %276 = vmatprep.mubr.f32.mxu0 0.0
    %277 = vmatmul.mubr.f32.gmra.mxu0 %v130
    %v278 = vpop.f32.mrf.mxu0
    %v279 = vadd.f32 0.0, %v278
    %v280 = vpop.f32.mrf.mxu0
    %281 = vmatprep.mubr.f32.mxu0 0.0
    %282 = vmatmul.mubr.f32.gmra.mxu0 %v133
    %v283 = vpop.f32.mrf.mxu0
    %v284 = vadd.f32 0.0, %v283
    %v285 = vpop.f32.mrf.mxu0
    %286 = vdwg.mxu0
    %v287 = vmul.f32 %v279, 0.5
    %v288 = vmul.f32 %v284, 0.5
    %v289 = vadd.f32 %v210, %v287
    %v290 = vadd.f32 %v211, %v288
    %291 = vmatprep.subr.mxu0 0.0
    %292 = vmatpush1.msra.mxu0 0.0
    %293 = vmatprep.subr.mxu0 0.0
    %294 = vmatpush1.msra.mxu0 0.0
    %295 = vmatprep.subr.mxu0 0.0
    %296 = vmatpush1.msra.mxu0 0.0
    %297 = vmatprep.subr.mxu0 0.0
    %298 = vmatpush1.msra.mxu0 0.0
    %299 = vmatprep.subr.mxu0 0.0
    %300 = vmatpush1.msra.mxu0 0.0
    %301 = vmatprep.subr.mxu0 0.0
    %302 = vmatpush1.msra.mxu0 0.0
    %303 = vmatprep.subr.mxu0 0.0
    %304 = vmatpush1.msra.mxu0 0.0
    %305 = vmatprep.subr.mxu0 0.0
    %306 = vmatpush1.msra.mxu0 0.0
    %307 = vmatprep.subr.mxu0 0.0
    %308 = vmatpush1.msra.mxu0 0.0
    %309 = vmatprep.subr.mxu0 0.0
    %310 = vmatpush1.msra.mxu0 0.0
    %311 = vmatprep.subr.mxu0 0.0
    %312 = vmatpush1.msra.mxu0 0.0
    %313 = vmatprep.subr.mxu0 0.0
    %314 = vmatpush1.msra.mxu0 0.0
    %315 = vmatprep.subr.mxu0 0.0
    %316 = vmatpush1.msra.mxu0 0.0
    %317 = vmatprep.subr.mxu0 0.0
    %318 = vmatpush1.msra.mxu0 0.0
    %319 = vmatprep.subr.mxu0 0.0
    %320 = vmatpush1.msra.mxu0 %v284
    %321 = vmatprep.subr.mxu0 0.0
    %322 = vmatpush1.msra.mxu0 %v279
    %323 = vmatprep.subr.mxu0 0.0
    %324 = vmatpush2.msra.mxu0 0.0
    %325 = vmatprep.subr.mxu0 0.0
    %326 = vmatpush2.msra.mxu0 0.0
    %327 = vmatprep.subr.mxu0 0.0
    %328 = vmatpush2.msra.mxu0 0.0
    %329 = vmatprep.subr.mxu0 0.0
    %330 = vmatpush2.msra.mxu0 0.0
    %331 = vmatprep.subr.mxu0 0.0
    %332 = vmatpush2.msra.mxu0 0.0
    %333 = vmatprep.subr.mxu0 0.0
    %334 = vmatpush2.msra.mxu0 0.0
    %335 = vmatprep.subr.mxu0 0.0
    %336 = vmatpush2.msra.mxu0 0.0
    %337 = vmatprep.subr.mxu0 0.0
    %338 = vmatpush2.msra.mxu0 0.0
    %339 = vmatprep.subr.mxu0 0.0
    %340 = vmatpush2.msra.mxu0 0.0
    %341 = vmatprep.subr.mxu0 0.0
    %342 = vmatpush2.msra.mxu0 0.0
    %343 = vmatprep.subr.mxu0 0.0
    %344 = vmatpush2.msra.mxu0 0.0
    %345 = vmatprep.subr.mxu0 0.0
    %346 = vmatpush2.msra.mxu0 0.0
    %347 = vmatprep.subr.mxu0 0.0
    %348 = vmatpush2.msra.mxu0 0.0
    %349 = vmatprep.subr.mxu0 0.0
    %350 = vmatpush2.msra.mxu0 0.0
    %351 = vmatprep.subr.mxu0 0.0
    %352 = vmatpush2.msra.mxu0 0.0
    %353 = vmatprep.subr.mxu0 0.0
    %354 = vmatpush2.msra.mxu0 0.0
    %355 = vmatprep.mubr.f32.mxu0 0.0
    %356 = vmatmul.mubr.f32.gmra.mxu0 %v130
    %v357 = vpop.f32.mrf.mxu0
    %v358 = vadd.f32 0.0, %v357
    %v359 = vpop.f32.mrf.mxu0
    %360 = vmatprep.mubr.f32.mxu0 0.0
    %361 = vmatmul.mubr.f32.gmra.mxu0 %v133
    %v362 = vpop.f32.mrf.mxu0
    %v363 = vadd.f32 0.0, %v362
    %v364 = vpop.f32.mrf.mxu0
    %365 = vdwg.mxu0
    %v366 = vmul.f32 %v358, 0.25
    %v367 = vmul.f32 %v363, 0.25
    %v368 = vadd.f32 %v289, %v366
    %v369 = vadd.f32 %v290, %v367
    %v370 = vld [vmem:[%s3] sm:$0xff]
    %v371 = vld [vmem:[%s3 + $0x8] sm:$0xff]
    %v372 = vsub.f32 %v370, %v368
    %v373 = vsub.f32 %v371, %v369
    %vm374 = vcmask 39936
    %375 = vst.msk [vmem:[%s5] sm:$0xff] %vm374, %v372
    %376 = vst.msk [vmem:[%s5 + $0x8] sm:$0xff] %vm374, %v373
    %v377 = vmul.f32 %v372, %v372
    %v378 = vmul.f32 %v373, %v373
    %v379 = vsel %vm374, %v377, 0.0
    %v380 = vsel %vm374, %v378, 0.0
    %v381 = vadd.f32 %v379, %v380
    %382 = vadd.xlane.f32.xlu0 %v381
    %v383 = vpop.xlane.xlu0 %382
    %v384 = vrot.slane %v383, 4
    %v385 = vadd.f32 %v383, %v384
    %v386 = vrot.slane %v385, 2
    %v387 = vadd.f32 %v385, %v386
    %v388 = vrot.slane %v387, 1
    %v389 = vadd.f32 %v387, %v388
    %s390 = vtos %v389
    %v391 = vstv %s390
    %v392 = vrsqrt.pop %v391
    %v393 = vmul.f32 %v391, %v392
    %vm394 = vcmp.eq.f32.partialorder %v391, inf
    %v395 = vsel %vm394, %v391, %v393
    %vm396 = vcmp.eq.f32.partialorder %v391, 0.0
    %v397 = vand.u32 %v391, 2147483648
    %v398 = vsel %vm396, %v397, %v395
    %v399 = vadd.f32 %v398, 1e-12
    %vm400 = vcmask 0
    %401 = vst.msk [vmem:[#allocation2] sm:$0x1] %vm400, %v399
    %v402 = vld [vmem:[%s4] sm:$0x1]
    %v403 = vadd.f32 %v27, %v402
    %v404 = vmax.f32 %v403, 0.0
    %vm405 = vcmask 253952
    %406 = vst.msk [vmem:[#allocation4] sm:$0x1] %vm405, %v404
    // Predicated region
    $region22: #{step.1} parent=1 // pred_check
      _
    $region23: #{step.1} parent=1 // pred_check_branch
      %408 = sbr.rel (0) target = $region25
    $region24: #{step.1} parent=1 // pred_region
      _
    $region25: #{step.1} parent=1 // pred_fallthru
      _
    // Predicated region
    $region26: #{step.1} parent=1 // pred_check
      _
    $region27: #{step.1} parent=1 // pred_check_branch
      %410 = sbr.rel (0) target = $region29
    $region28: #{step.1} parent=1 // pred_region
      %s412 = ssub.s32 16, 16
      %413 = vsyncadd [#allocation3], %s412
      %s415 = sshll.u32 [#allocation2], 4
      %s416 = int_to_ptr.vmem [resolvable:$true] %s415
      %418 = dma.vmem_to_hbm [thread:$0]  %s416, 16, %s6, [#allocation3]
    $region29: #{step.1} parent=1 // pred_fallthru
      _
    // Predicated region
    $region30: #{step.1} parent=1 // pred_check
      _
    $region31: #{step.1} parent=1 // pred_check_branch
      %420 = sbr.rel (0) target = $region33
    $region32: #{step.1} parent=1 // pred_region
      %s422 = ssub.s32 16, 16
      %423 = vsyncadd [#allocation5], %s422
      %s425 = sshll.u32 [#allocation4], 4
      %s426 = int_to_ptr.vmem [resolvable:$true] %s425
      %428 = dma.vmem_to_hbm [thread:$0]  %s426, 16, %s7, [#allocation5]
    $region33: #{step.1} parent=1 // pred_fallthru
      _
    // Predicated region
    $region34: #{step.1} parent=1 // pred_check
      _
    $region35: #{step.1} parent=1 // pred_check_branch
      %430 = sbr.rel (0) target = $region37
    $region36: #{step.1} parent=1 // pred_region
      _
    $region37: #{step.1} parent=1 // pred_fallthru
      _
    // Predicated region
    $region38: #{step.1} parent=1 // pred_check
      _
    $region39: #{step.1} parent=1 // pred_check_branch
      %432 = sbr.rel (0) target = $region41
    $region40: #{step.1} parent=1 // pred_region
      %433 = dma.done [#allocation3], 16
    $region41: #{step.1} parent=1 // pred_fallthru
      _
    // Predicated region
    $region42: #{step.1} parent=1 // pred_check
      _
    $region43: #{step.1} parent=1 // pred_check_branch
      %435 = sbr.rel (0) target = $region45
    $region44: #{step.1} parent=1 // pred_region
      %436 = dma.done [#allocation5], 16
    $region45: #{step.1} parent=1 // pred_fallthru
      _
    %437 = vsyncpa [#allocation3], 1
    %438 = vsyncpa [#allocation5], 1

</llo_original>
